<compile_context>
chip_gen: v7x
topology: tpu7x:2x2x1
jax: 0.10.0
libtpu: 0.0.40
codegen_flags: <defaults>
</compile_context>

<pallas_src>
import functools

import jax
import jax.numpy as jnp
from jax import lax
from jax.experimental import pallas as pl
from jax.experimental.pallas import tpu as pltpu


def _round_up(v: int, m: int) -> int:
    return ((v + m - 1) // m) * m


def _row_losses(x_ref, t_ref, r0, rpc):
    """Soft-target CE per row for one (rpc, C) chunk: sum_c -t*log_softmax(x)."""
    x = x_ref[pl.ds(r0, rpc), :].astype(jnp.float32)            # (rpc, C)
    t = t_ref[pl.ds(r0, rpc), :].astype(jnp.float32)            # (rpc, C)
    m = jnp.max(x, axis=-1, keepdims=True)                      # (rpc, 1) XLU
    z = x - m
    lse = jnp.log(jnp.sum(jnp.exp(z), axis=-1, keepdims=True))  # EUP + XLU
    # -t * log_softmax(x) = t * (lse - z); reduce classes here so carried state
    # and output traffic are independent of C.
    return jnp.sum(t * (lse - z), axis=-1, keepdims=True)       # (rpc, 1)


def _soft_target_xent_kernel(x_ref, t_ref, o_ref, *, rpc: int, tile_n: int,
                             tail_rows: int, num_blocks: int, unroll: int):
    """One grid step: (tile_n, C) block -> (1, rpc, 1) per-sublane loss sums."""
    n_chunks = tile_n // rpc
    tail_full = tail_rows // rpc          # static: full chunks in the tail block
    tail_rem = tail_rows - tail_full * rpc  # static: valid rows in the last chunk
    init = jnp.zeros((rpc, 1), jnp.float32)

    def full_body(j, acc):
        r0 = pl.multiple_of(j * rpc, rpc)
        return acc + _row_losses(x_ref, t_ref, r0, rpc)

    def run_full():
        acc = lax.fori_loop(0, n_chunks, full_body, init,
                            unroll=max(1, min(unroll, n_chunks)))
        o_ref[...] = acc[None, :, :]

    def run_tail():
        acc = init
        if tail_full > 0:
            acc = lax.fori_loop(0, tail_full, full_body, init,
                                unroll=max(1, min(unroll, tail_full)))
        if tail_rem > 0:
            # Single partial chunk: mask the already-reduced (rpc, 1) row losses
            # so unspecified rows of the edge block contribute exactly zero
            # (select does not propagate NaN/Inf from the unselected branch).
            r0 = tail_full * rpc
            rl = _row_losses(x_ref, t_ref, r0, rpc)
            sub = lax.broadcasted_iota(jnp.int32, (rpc, 1), 0)
            acc = acc + jnp.where(sub < tail_rem, rl, 0.0)
        o_ref[...] = acc[None, :, :]

    if tail_rows == tile_n:
        # Every block is fully in-bounds: no masking anywhere.
        run_full()
    elif num_blocks == 1:
        run_tail()
    else:
        i = pl.program_id(0)
        pl.when(i < num_blocks - 1)(run_full)
        pl.when(i == num_blocks - 1)(run_tail)


def _choose_chunk_rows(c: int) -> int:
    # ~8 vregs (8 * 1024 f32 elems) per (rpc, C) temporary: big enough to fill
    # the 4 VALU slots and hide XLU reduce latency, small enough to avoid spills.
    rpc = (8 * 1024) // max(1, c)
    return max(8, min(256, (rpc // 8) * 8))


def soft_target_cross_entropy(x: jax.Array, target: jax.Array, *, tile_n=None) -> jax.Array:
    """Pallas-TPU SoftTargetCrossEntropy: mean_i sum_c -target[i,c]*log_softmax(x)[i,c]."""
    assert x.shape == target.shape, (x.shape, target.shape)
    c = x.shape[-1]
    x2 = x.reshape(-1, c)
    t2 = target.reshape(-1, c)
    n = x2.shape[0]                      # true number of rows (mask + mean)

    # Very small batches: pad to one sublane group (cheap; rows >= n are masked).
    if n < 8:
        pad = 8 - n
        x2 = jnp.pad(x2, ((0, pad), (0, 0)))
        t2 = jnp.pad(t2, ((0, pad), (0, 0)))
    n_rows = x2.shape[0]

    itemsize = max(x2.dtype.itemsize, t2.dtype.itemsize)

    # Rows processed per fori_loop iteration (multiple of 8, never >> data).
    rpc = _choose_chunk_rows(c)
    rpc = min(rpc, _round_up(n_rows, 8))

    # Hardware-aware VMEM budget (v7x: 64 MiB/TC -> ~40 MiB; v5e/v6e: ~80 MiB cap).
    try:
        vmem_cap = int(pltpu.get_tpu_info().vmem_capacity_bytes)
    except Exception:  # pragma: no cover - conservative fallback
        vmem_cap = 64 << 20
    budget = min((vmem_cap * 5) // 8, 96 << 20)
    slack = 4 << 20
    # 2 inputs x 2 pipeline buffers per block must fit under the budget.
    max_tile = max(rpc, ((budget - slack) // max(1, 4 * c * itemsize)) // rpc * rpc)
    # TODO(synk): for C so large that even an 8-row block exceeds VMEM, a
    # class-tiled two-pass (carry m and lse across class tiles) variant is needed.

    if tile_n is None:
        # ~4 MiB per input block amortizes per-step overhead on all generations.
        t_target = (4 << 20) // max(1, c * itemsize)
        t_target = max(rpc, min(4096, (t_target // rpc) * rpc))
    else:
        user_t = max(8, (int(tile_n) // 8) * 8)
        rpc = min(rpc, user_t)
        t_target = _round_up(user_t, rpc)
    t_target = max(rpc, min(t_target, max_tile))

    # Balance blocks: all blocks get ~equal valid rows (no ~empty trailing block).
    num_blocks = -(-n_rows // t_target)
    tile_n_final = min(_round_up(-(-n_rows // num_blocks), rpc), t_target)
    num_blocks = int(-(-n_rows // tile_n_final))
    tail_rows = int(n - (num_blocks - 1) * tile_n_final)   # valid rows, last block

    # Unroll the inner loop more aggressively when chunks are small.
    if rpc <= 16:
        unroll = 8
    elif rpc <= 64:
        unroll = 4
    else:
        unroll = 2

    vmem_limit = int(min(budget, max(32 << 20,
                                     4 * tile_n_final * c * itemsize + slack)))

    kernel = functools.partial(
        _soft_target_xent_kernel,
        rpc=int(rpc), tile_n=int(tile_n_final), tail_rows=tail_rows,
        num_blocks=num_blocks, unroll=unroll)

    partials = pl.pallas_call(
        kernel,
        out_shape=jax.ShapeDtypeStruct((num_blocks, rpc, 1), jnp.float32),
        grid_spec=pltpu.PrefetchScalarGridSpec(
            num_scalar_prefetch=0,
            grid=(num_blocks,),
            in_specs=[
                pl.BlockSpec((tile_n_final, c), lambda i: (i, 0)),
                pl.BlockSpec((tile_n_final, c), lambda i: (i, 0)),
            ],
            out_specs=pl.BlockSpec((1, rpc, 1), lambda i: (i, 0, 0)),
        ),
        compiler_params=pltpu.CompilerParams(
            dimension_semantics=("parallel",),   # no carried state -> megacore OK
            vmem_limit_bytes=vmem_limit,
        ),
    )(x2, t2)

    # Tiny final reduction (num_blocks * rpc values) done by XLA.
    return jnp.sum(partials) / jnp.float32(n)


def _reference(x, target):
    log_sm = jax.nn.log_softmax(x.astype(jnp.float32), axis=-1)
    return jnp.mean(jnp.sum(-target.astype(jnp.float32) * log_sm, axis=-1))


if __name__ == "__main__":
    key = jax.random.PRNGKey(0)
    kx, kt = jax.random.split(key)

    # Small shapes consistent with the (N, C) soft-target cross-entropy module.
    N, C = 16, 32
    x = jax.random.normal(kx, (N, C), dtype=jnp.float32)
    target = jax.nn.softmax(jax.random.normal(kt, (N, C), dtype=jnp.float32), axis=-1)

    loss = jax.block_until_ready(soft_target_cross_entropy(x, target))
    ref = _reference(x, target)
    assert jnp.allclose(loss, ref, rtol=1e-5, atol=1e-5), (loss, ref)

    # Multi-block path with a partial (masked) tail block, C not a multiple of 128.
    N2, C2 = 13, 160
    x2 = jax.random.normal(jax.random.PRNGKey(1), (N2, C2), dtype=jnp.float32)
    t2 = jax.nn.softmax(jax.random.normal(jax.random.PRNGKey(2), (N2, C2), dtype=jnp.float32), axis=-1)
    loss2 = jax.block_until_ready(soft_target_cross_entropy(x2, t2, tile_n=8))
    ref2 = _reference(x2, t2)
    assert jnp.allclose(loss2, ref2, rtol=1e-5, atol=1e-5), (loss2, ref2)

    # Three balanced blocks, unmasked full-block hot path + masked tail chunk.
    N3, C3 = 70, 64
    x3 = jax.random.normal(jax.random.PRNGKey(3), (N3, C3), dtype=jnp.float32)
    t3 = jax.nn.softmax(jax.random.normal(jax.random.PRNGKey(4), (N3, C3), dtype=jnp.float32), axis=-1)
    loss3 = jax.block_until_ready(soft_target_cross_entropy(x3, t3, tile_n=32))
    ref3 = _reference(x3, t3)
    assert jnp.allclose(loss3, ref3, rtol=1e-5, atol=1e-5), (loss3, ref3)

    # Batch smaller than one sublane group (pad + mask path).
    N4, C4 = 5, 16
    x4 = jax.random.normal(jax.random.PRNGKey(5), (N4, C4), dtype=jnp.float32)
    t4 = jax.nn.softmax(jax.random.normal(jax.random.PRNGKey(6), (N4, C4), dtype=jnp.float32), axis=-1)
    loss4 = jax.block_until_ready(soft_target_cross_entropy(x4, t4))
    ref4 = _reference(x4, t4)
    assert jnp.allclose(loss4, ref4, rtol=1e-5, atol=1e-5), (loss4, ref4)

    # bf16 inputs (halves HBM traffic); math is still f32 in-kernel.
    xb = x.astype(jnp.bfloat16)
    tb = target.astype(jnp.bfloat16)
    loss5 = jax.block_until_ready(soft_target_cross_entropy(xb, tb))
    ref5 = _reference(xb, tb)
    assert jnp.allclose(loss5, ref5, rtol=1e-4, atol=1e-4), (loss5, ref5)

    print("KERNEL_OK")
</pallas_src>

<mosaic_0001>
module attributes {stable_mosaic.version = 11 : i64} {
  func.func @_soft_target_xent_kernel(%arg0: i32, %arg1: memref<16x32xf32, #tpu.memory_space<vmem>>, %arg2: memref<16x32xf32, #tpu.memory_space<vmem>>, %arg3: memref<1x16x1xf32, #tpu.memory_space<vmem>>) attributes {dimension_semantics = [#tpu.dimension_semantics<parallel>], iteration_bounds = array<i64: 1>, scalar_prefetch = 0 : i64, scratch_operands = 0 : i64, tpu.core_type = #tpu.core_type<tc>, window_params = [{transform_indices = @transform_0, window_bounds = array<i64: 16, 32>}, {transform_indices = @transform_1, window_bounds = array<i64: 16, 32>}, {transform_indices = @transform_2, window_bounds = array<i64: 1, 16, 1>}]} {
    %cst = arith.constant 0.000000e+00 : f32
    %0 = vector.broadcast %cst : f32 to vector<16x1xf32>
    %c0_i32 = arith.constant 0 : i32
    %c16_i32 = arith.constant 16 : i32
    %1 = arith.muli %c0_i32, %c16_i32 : i32
    %2 = tpu.assume_multiple %1, 16 : i32
    %3 = arith.index_cast %2 : i32 to index
    %c0 = arith.constant 0 : index
    %4 = vector.load %arg1[%3, %c0] : memref<16x32xf32, #tpu.memory_space<vmem>>, vector<16x32xf32>
    %5 = arith.index_cast %2 : i32 to index
    %c0_0 = arith.constant 0 : index
    %6 = vector.load %arg2[%5, %c0_0] : memref<16x32xf32, #tpu.memory_space<vmem>>, vector<16x32xf32>
    %cst_1 = arith.constant dense<0xFF800000> : vector<16xf32>
    %7 = vector.multi_reduction <maximumf>, %4, %cst_1 [1] : vector<16x32xf32> to vector<16xf32>
    %8 = vector.shape_cast %7 : vector<16xf32> to vector<16x1xf32>
    %9 = vector.broadcast %8 : vector<16x1xf32> to vector<16x32xf32>
    %10 = arith.subf %4, %9 : vector<16x32xf32>
    %11 = math.exp %10 : vector<16x32xf32>
    %cst_2 = arith.constant dense<0.000000e+00> : vector<16xf32>
    %12 = vector.multi_reduction <add>, %11, %cst_2 [1] : vector<16x32xf32> to vector<16xf32>
    %13 = vector.shape_cast %12 : vector<16xf32> to vector<16x1xf32>
    %14 = math.log %13 : vector<16x1xf32>
    %15 = vector.broadcast %14 : vector<16x1xf32> to vector<16x32xf32>
    %16 = arith.subf %15, %10 : vector<16x32xf32>
    %17 = arith.mulf %6, %16 : vector<16x32xf32>
    %cst_3 = arith.constant dense<0.000000e+00> : vector<16xf32>
    %18 = vector.multi_reduction <add>, %17, %cst_3 [1] : vector<16x32xf32> to vector<16xf32>
    %19 = vector.shape_cast %18 : vector<16xf32> to vector<16x1xf32>
    %20 = arith.addf %0, %19 : vector<16x1xf32>
    %c1_i32 = arith.constant 1 : i32
    %21 = vector.shape_cast %20 : vector<16x1xf32> to vector<1x16x1xf32>
    %c0_4 = arith.constant 0 : index
    %c0_5 = arith.constant 0 : index
    %c0_6 = arith.constant 0 : index
    %22 = vector.load %arg3[%c0_4, %c0_5, %c0_6] : memref<1x16x1xf32, #tpu.memory_space<vmem>>, vector<1x16x1xf32>
    tpu.vector_store %arg3[%c0_4, %c0_5, %c0_6], %21 {strides = array<i32>} : memref<1x16x1xf32, #tpu.memory_space<vmem>>, vector<1x16x1xf32>,
    return
  }
  func.func @transform_0(%arg0: i32) -> (i32, i32) {
    %c0_i32 = arith.constant 0 : i32
    %c0_i32_0 = arith.constant 0 : i32
    return %arg0, %c0_i32 : i32, i32
  }
  func.func @transform_1(%arg0: i32) -> (i32, i32) {
    %c0_i32 = arith.constant 0 : i32
    %c0_i32_0 = arith.constant 0 : i32
    return %arg0, %c0_i32 : i32, i32
  }
  func.func @transform_2(%arg0: i32) -> (i32, i32, i32) {
    %c0_i32 = arith.constant 0 : i32
    %c0_i32_0 = arith.constant 0 : i32
    %c0_i32_1 = arith.constant 0 : i32
    return %arg0, %c0_i32, %c0_i32_0 : i32, i32, i32
  }
}

</mosaic_0001>

<llo_original>
// kernel: tpu_custom_call.1
$region0: #{tpu_custom_call.1}
  #allocation0 [shape = 'u32[]', space=smem, size = 0x4, offset = 0x4, fixed_abs, tag = 'smem constant byte address 0x4 - core index']
  #allocation1 [shape = 'u32[144,128]{1,0:T(1,128)}', space=vmem, size = 0x12000, scoped, tag = 'internal scratch']
  %s0 = inlined_call_operand.hbm [shape: f32[16,32], index: 0, kind: input, shape index: {}]
  %s1 = inlined_call_operand.hbm [shape: f32[16,32], index: 1, kind: input, shape index: {}]
  %s2 = inlined_call_operand.vmem [shape: f32[1,16,1], index: 2, kind: output, shape index: {}]
  %s3 = sld [smem:[#allocation0]]
  $region26: #{tpu_custom_call.1} parent=0
    _
  %s5 = ssub.s32 1, %s3
  %s6 = scalar_select 0, %s5, %s3
  $region1: #{tpu_custom_call.1} parent=0
    #allocation2 [shape = 'u8[8192]{0}', space=vmem, size = 0x2000, scoped, tag = 'input window, operand 0, single buffered']
    #allocation3 [shape = 's32[1]{0}', space=sflag, size = 0x4, scoped, tag = 'scoped memory for tpu_custom_call.1']
    #allocation4 [shape = 'u8[8192]{0}', space=vmem, size = 0x2000, scoped, tag = 'input window, operand 1, single buffered']
    #allocation5 [shape = 's32[1]{0}', space=sflag, size = 0x4, scoped, tag = 'scoped memory for tpu_custom_call.1']
    %7 = vsyncpa [#allocation3], 0
    %8 = vsyncpa [#allocation5], 0
    // Predicated region
    $region2: #{tpu_custom_call.1} parent=1 // pred_check
      _
    $region3: #{tpu_custom_call.1} parent=1 // pred_check_branch
      %10 = sbr.rel (0) target = $region5
    $region4: #{tpu_custom_call.1} parent=1 // pred_region
      %s12 = ssub.s32 256, 256
      %13 = vsyncadd [#allocation3], %s12
      %s14 = sshll.u32 [#allocation2], 4
      %s15 = int_to_ptr.vmem [resolvable:$true] %s14
      %20 = dma.hbm_to_vmem [thread:$0]  %s0, 256, %s15, [#allocation3], 128, 128, 8
    $region5: #{tpu_custom_call.1} parent=1 // pred_fallthru
      _
    // Predicated region
    $region6: #{tpu_custom_call.1} parent=1 // pred_check
      _
    $region7: #{tpu_custom_call.1} parent=1 // pred_check_branch
      %22 = sbr.rel (0) target = $region9
    $region8: #{tpu_custom_call.1} parent=1 // pred_region
      %s24 = ssub.s32 256, 256
      %25 = vsyncadd [#allocation5], %s24
      %s26 = sshll.u32 [#allocation4], 4
      %s27 = int_to_ptr.vmem [resolvable:$true] %s26
      %32 = dma.hbm_to_vmem [thread:$0]  %s1, 256, %s27, [#allocation5], 128, 128, 8
    $region9: #{tpu_custom_call.1} parent=1 // pred_fallthru
      _
    // Predicated region
    $region10: #{tpu_custom_call.1} parent=1 // pred_check
      _
    $region11: #{tpu_custom_call.1} parent=1 // pred_check_branch
      %34 = sbr.rel (0) target = $region13
    $region12: #{tpu_custom_call.1} parent=1 // pred_region
      %35 = dma.done [#allocation3], 256
    $region13: #{tpu_custom_call.1} parent=1 // pred_fallthru
      _
    // Predicated region
    $region14: #{tpu_custom_call.1} parent=1 // pred_check
      _
    $region15: #{tpu_custom_call.1} parent=1 // pred_check_branch
      %37 = sbr.rel (0) target = $region17
    $region16: #{tpu_custom_call.1} parent=1 // pred_region
      %38 = dma.done [#allocation5], 256
    $region17: #{tpu_custom_call.1} parent=1 // pred_fallthru
      _
    %v39 = vld [vmem:[#allocation2] sm:$0xff]
    %v40 = vld [vmem:[#allocation2 + $0x8] sm:$0xff]
    %v41 = vld [vmem:[#allocation4] sm:$0xff]
    %v42 = vld [vmem:[#allocation4 + $0x8] sm:$0xff]
    %vm43 = vcmask 261120
    %v44 = vsel %vm43, %v39, -inf
    %45 = vmax.xlane.f32.xlu0 %v44
    %v46 = vpop.xlane.xlu0 %45
    %v47 = vsel %vm43, %v40, -inf
    %48 = vmax.xlane.f32.xlu0 %v47
    %v49 = vpop.xlane.xlu0 %48
    %v50 = vsub.f32 %v39, %v46
    %v51 = vsub.f32 %v40, %v49
    %v52 = vmul.f32 %v50, 1.442695
    %v53 = vpow.pop %v52
    %v54 = vmul.f32 %v51, 1.442695
    %v55 = vpow.pop %v54
    %v56 = vsel %vm43, %v53, 0.0
    %57 = vadd.xlane.f32.xlu0 %v56
    %v58 = vpop.xlane.xlu0 %57
    %v59 = vsel %vm43, %v55, 0.0
    %60 = vadd.xlane.f32.xlu0 %v59
    %v61 = vpop.xlane.xlu0 %60
    %v62 = vlog2.pop %v58
    %v63 = vmul.f32 %v62, 0.6931472
    %v64 = vlog2.pop %v61
    %v65 = vmul.f32 %v64, 0.6931472
    %v66 = vsub.f32 %v63, %v50
    %v67 = vsub.f32 %v65, %v51
    %v68 = vmul.f32 %v41, %v66
    %v69 = vmul.f32 %v42, %v67
    %v70 = vsel %vm43, %v68, 0.0
    %71 = vadd.xlane.f32.xlu0 %v70
    %v72 = vpop.xlane.xlu0 %71
    %v73 = vsel %vm43, %v69, 0.0
    %74 = vadd.xlane.f32.xlu0 %v73
    %v75 = vpop.xlane.xlu0 %74
    %v76 = vadd.f32 %v72, 0.0
    %v77 = vadd.f32 %v75, 0.0
    %vm78 = vcmask 7168
    %79 = vst.msk [vmem:[%s2] sm:$0xff] %vm78, %v76
    %80 = vst.msk [vmem:[%s2 + $0x8] sm:$0xff] %vm78, %v77
    // Predicated region
    $region18: #{tpu_custom_call.1} parent=1 // pred_check
      _
    $region19: #{tpu_custom_call.1} parent=1 // pred_check_branch
      %82 = sbr.rel (0) target = $region21
    $region20: #{tpu_custom_call.1} parent=1 // pred_region
      _
    $region21: #{tpu_custom_call.1} parent=1 // pred_fallthru
      _
    // Predicated region
    $region22: #{tpu_custom_call.1} parent=1 // pred_check
      _
    $region23: #{tpu_custom_call.1} parent=1 // pred_check_branch
      %84 = sbr.rel (0) target = $region25
    $region24: #{tpu_custom_call.1} parent=1 // pred_region
      _
    $region25: #{tpu_custom_call.1} parent=1 // pred_fallthru
      _
    %85 = vsyncpa [#allocation3], 1
    %86 = vsyncpa [#allocation5], 1

</llo_original>
